<compile_context>
chip_gen: v7x
topology: tpu7x:2x2x1
jax: 0.10.0
libtpu: 0.0.40
codegen_flags: <defaults>
</compile_context>

<pallas_src>
import numpy as np

import jax
import jax.numpy as jnp
from jax import lax
from jax.experimental import pallas as pl
from jax.experimental.pallas import tpu as pltpu


def _relu6(x):
    return jnp.clip(x, 0.0, 6.0)


# ---------------------------------------------------------------------------
# Pallas kernel: one batch element per grid step.
# ---------------------------------------------------------------------------
def _spatial_attn_kernel(xp_ref, a_h_ref, a_wt_ref, w1_ref, b_ref, out_ref):
    """
    xp_ref  : (1, C, H+2, W+2)  zero-padded NCHW input block (one batch elem)
    a_h_ref : (H_out, H)        stride-2 select + bilinear rows; conv2*BN2 scale folded in
    a_wt_ref: (W, W_out)        stride-2 select + bilinear cols (transposed)
    w1_ref  : (3, 3)   SMEM     conv1 weights with BN1 scale and 1/C mean folded
    b_ref   : (2,)     SMEM     [b1_folded, b2_folded]
    out_ref : (1, H_out, W_out)
    """
    H = xp_ref.shape[2] - 2
    W = xp_ref.shape[3] - 2

    # Channel mean (the 1/C factor is folded into w1) on the padded image.
    xs = jnp.sum(xp_ref[0], axis=0)                      # (H+2, W+2) f32

    # 3x3 / pad=1 / stride=1 conv as 9 scalar-weighted shifted taps (VPU).
    # The stride-2 down-selection is folded into a_h / a_wt below.
    acc = jnp.zeros((H, W), jnp.float32)
    for dy in range(3):
        for dx in range(3):
            acc = acc + w1_ref[dy, dx] * xs[dy:dy + H, dx:dx + W]
    act = _relu6(acc + b_ref[0])                         # conv1 + BN1 + relu6

    # stride-2 select + 2x bilinear upsample (align_corners=True) + conv2
    # weight + BN2 scale, all folded into a_h / a_wt -> two MXU matmuls.
    mid = jnp.dot(a_h_ref[...], act, preferred_element_type=jnp.float32)
    up = jnp.dot(mid, a_wt_ref[...], preferred_element_type=jnp.float32)

    out_ref[0, :, :] = _relu6(up + b_ref[1]).astype(out_ref.dtype)


# ---------------------------------------------------------------------------
# Host-side construction of the (selection x bilinear-upsample) matrices.
# ---------------------------------------------------------------------------
def _upsample_matrix(n_in, n_out):
    """Bilinear interpolation matrix U (n_out, n_in), align_corners=True."""
    U = np.zeros((n_out, n_in), np.float32)
    if n_in == 1 or n_out == 1:
        U[:, 0] = 1.0
        return U
    for o in range(n_out):
        src = o * (n_in - 1) / (n_out - 1)
        i0 = min(int(np.floor(src)), n_in - 1)
        i1 = min(i0 + 1, n_in - 1)
        t = src - i0
        U[o, i0] += 1.0 - t
        U[o, i1] += t
    return U


def _select_matrix(n_sel, n_full, stride=2):
    """Selection matrix S (n_sel, n_full): S[i, stride*i] = 1."""
    S = np.zeros((n_sel, n_full), np.float32)
    for i in range(n_sel):
        S[i, stride * i] = 1.0
    return S


# ---------------------------------------------------------------------------
# Wrapper: fold BN / scales, build matrices, launch pallas_call.
# ---------------------------------------------------------------------------
def spatial_attn_pallas(x, params, eps=1e-5):
    """x: (N, C, H, W) float32 -> (N, 1, 2*ceil(H/2), 2*ceil(W/2)) float32."""
    N, C, H, W = x.shape
    H2 = (H - 1) // 2 + 1                    # conv1 output (k=3, s=2, p=1)
    W2 = (W - 1) // 2 + 1
    H_out, W_out = 2 * H2, 2 * W2

    # ---- BN (inference / running stats) folding --------------------------
    s1 = params["bn1_gamma"] * lax.rsqrt(params["bn1_var"] + eps)
    b1 = params["bn1_beta"] - params["bn1_mean"] * s1
    s2 = params["bn2_gamma"] * lax.rsqrt(params["bn2_var"] + eps)
    b2 = params["bn2_beta"] - params["bn2_mean"] * s2

    w1f = (params["conv1_w"] * (s1 / C)).astype(jnp.float32)   # fold BN1 + 1/C mean
    w2f = params["conv2_w"] * s2                               # fold BN2 into conv2

    # ---- stride-2 selection + bilinear(align_corners=True) as matrices ----
    a_h_np = _upsample_matrix(H2, H_out) @ _select_matrix(H2, H)   # (H_out, H)
    a_w_np = _upsample_matrix(W2, W_out) @ _select_matrix(W2, W)   # (W_out, W)
    a_h = jnp.asarray(a_h_np, jnp.float32) * w2f      # fold conv2 weight + BN2 scale
    a_wt = jnp.asarray(np.ascontiguousarray(a_w_np.T), jnp.float32)  # (W, W_out)
    bvec = jnp.stack([b1, b2]).astype(jnp.float32)                   # (2,)

    # Zero-pad spatial dims once in the wrapper (pad of the mean == mean of pad).
    xp = jnp.pad(x, ((0, 0), (0, 0), (1, 1), (1, 1)))  # (N, C, H+2, W+2)

    out = pl.pallas_call(
        _spatial_attn_kernel,
        out_shape=jax.ShapeDtypeStruct((N, H_out, W_out), jnp.float32),
        grid_spec=pltpu.PrefetchScalarGridSpec(
            num_scalar_prefetch=0,
            grid=(N,),
            in_specs=[
                pl.BlockSpec((1, C, H + 2, W + 2), lambda n: (n, 0, 0, 0)),
                pl.BlockSpec((H_out, H), lambda n: (0, 0)),
                pl.BlockSpec((W, W_out), lambda n: (0, 0)),
                pl.BlockSpec(memory_space=pltpu.MemorySpace.SMEM),
                pl.BlockSpec(memory_space=pltpu.MemorySpace.SMEM),
            ],
            out_specs=pl.BlockSpec((1, H_out, W_out), lambda n: (n, 0, 0)),
        ),
        compiler_params=pltpu.CompilerParams(
            dimension_semantics=("parallel",)),
    )(xp, a_h, a_wt, w1f, bvec)

    return out.reshape(N, 1, H_out, W_out)


# ---------------------------------------------------------------------------
# Deterministic parameter construction.
# ---------------------------------------------------------------------------
def make_params(key):
    ks = jax.random.split(key, 4)

    def bn_stats(k):
        kg, kb, km, kv = jax.random.split(k, 4)
        return (1.0 + 0.1 * jax.random.normal(kg, ()),
                0.1 * jax.random.normal(kb, ()),
                0.1 * jax.random.normal(km, ()),
                0.5 + jnp.abs(jax.random.normal(kv, ())))

    p = {}
    p["conv1_w"] = 0.5 * jax.random.normal(ks[0], (3, 3), jnp.float32)
    p["conv2_w"] = 1.0 + 0.3 * jax.random.normal(ks[1], (), jnp.float32)
    (p["bn1_gamma"], p["bn1_beta"], p["bn1_mean"], p["bn1_var"]) = bn_stats(ks[2])
    (p["bn2_gamma"], p["bn2_beta"], p["bn2_mean"], p["bn2_var"]) = bn_stats(ks[3])
    return p


# ---------------------------------------------------------------------------
# Pure-JAX reference (independent path: lax.conv + gather-based upsample).
# ---------------------------------------------------------------------------
def _bn(y, gamma, beta, mean, var, eps=1e-5):
    return gamma * (y - mean) / jnp.sqrt(var + eps) + beta


def _upsample_bilinear_ac(y, out_h, out_w):
    """PyTorch F.upsample(mode='bilinear', align_corners=True) on NCHW."""
    n, c, h, w = y.shape
    hs = jnp.linspace(0.0, h - 1.0, out_h) if h > 1 else jnp.zeros((out_h,), jnp.float32)
    ws = jnp.linspace(0.0, w - 1.0, out_w) if w > 1 else jnp.zeros((out_w,), jnp.float32)
    h0 = jnp.floor(hs).astype(jnp.int32)
    h1 = jnp.minimum(h0 + 1, h - 1)
    th = (hs - h0.astype(hs.dtype)).reshape(1, 1, out_h, 1)
    w0 = jnp.floor(ws).astype(jnp.int32)
    w1 = jnp.minimum(w0 + 1, w - 1)
    tw = (ws - w0.astype(ws.dtype)).reshape(1, 1, 1, out_w)

    rows0 = jnp.take(y, h0, axis=2)
    rows1 = jnp.take(y, h1, axis=2)
    v00 = jnp.take(rows0, w0, axis=3)
    v01 = jnp.take(rows0, w1, axis=3)
    v10 = jnp.take(rows1, w0, axis=3)
    v11 = jnp.take(rows1, w1, axis=3)
    top = v00 * (1.0 - tw) + v01 * tw
    bot = v10 * (1.0 - tw) + v11 * tw
    return top * (1.0 - th) + bot * th


def spatial_attn_ref(x, params, eps=1e-5):
    xm = jnp.mean(x, axis=1, keepdims=True)                       # (N,1,H,W)
    w1 = params["conv1_w"].reshape(1, 1, 3, 3)                    # OIHW
    y = lax.conv_general_dilated(
        xm, w1, window_strides=(2, 2), padding=((1, 1), (1, 1)),
        dimension_numbers=("NCHW", "OIHW", "NCHW"),
        precision=lax.Precision.HIGHEST)
    y = _relu6(_bn(y, params["bn1_gamma"], params["bn1_beta"],
                   params["bn1_mean"], params["bn1_var"], eps))
    y = _upsample_bilinear_ac(y, 2 * y.shape[2], 2 * y.shape[3])
    y = y * params["conv2_w"]                                     # 1x1 conv, 1->1 ch
    y = _relu6(_bn(y, params["bn2_gamma"], params["bn2_beta"],
                   params["bn2_mean"], params["bn2_var"], eps))
    return y


if __name__ == "__main__":
    key = jax.random.PRNGKey(0)
    k_x, k_p = jax.random.split(key)

    N, C, H, W = 2, 4, 16, 16
    x = jax.random.normal(k_x, (N, C, H, W), dtype=jnp.float32)
    params = make_params(k_p)

    y = jax.block_until_ready(spatial_attn_pallas(x, params))
    y_ref = jax.block_until_ready(spatial_attn_ref(x, params))

    assert y.shape == y_ref.shape, (y.shape, y_ref.shape)
    assert y.shape == (N, 1, H, W), y.shape
    np.testing.assert_allclose(np.asarray(y), np.asarray(y_ref),
                               rtol=1e-3, atol=1e-3)

    print("KERNEL_OK")
</pallas_src>

<mosaic_0001>
module attributes {stable_mosaic.version = 11 : i64} {
  func.func @_spatial_attn_kernel(%arg0: i32, %arg1: memref<1x4x18x18xf32, #tpu.memory_space<vmem>>, %arg2: memref<16x16xf32, #tpu.memory_space<vmem>>, %arg3: memref<16x16xf32, #tpu.memory_space<vmem>>, %arg4: memref<3x3xf32, #tpu.memory_space<smem>>, %arg5: memref<2xf32, #tpu.memory_space<smem>>, %arg6: memref<1x16x16xf32, #tpu.memory_space<vmem>>) attributes {dimension_semantics = [#tpu.dimension_semantics<parallel>], iteration_bounds = array<i64: 2>, scalar_prefetch = 0 : i64, scratch_operands = 0 : i64, tpu.core_type = #tpu.core_type<tc>, window_params = [{transform_indices = @transform_0, window_bounds = array<i64: 1, 4, 18, 18>}, {pipeline_mode = #tpu.pipeline_mode<synchronous>, transform_indices = @transform_1, window_bounds = array<i64: 16, 16>}, {pipeline_mode = #tpu.pipeline_mode<synchronous>, transform_indices = @transform_2, window_bounds = array<i64: 16, 16>}, {transform_indices = @transform_3, window_bounds = array<i64: 3, 3>}, {transform_indices = @transform_4, window_bounds = array<i64: 2>}, {transform_indices = @transform_5, window_bounds = array<i64: 1, 16, 16>}]} {
    %c0 = arith.constant 0 : index
    %c0_0 = arith.constant 0 : index
    %c0_1 = arith.constant 0 : index
    %c0_2 = arith.constant 0 : index
    %0 = vector.load %arg1[%c0, %c0_0, %c0_1, %c0_2] : memref<1x4x18x18xf32, #tpu.memory_space<vmem>>, vector<1x4x18x18xf32>
    %1 = vector.shape_cast %0 : vector<1x4x18x18xf32> to vector<4x18x18xf32>
    %cst = arith.constant dense<0.000000e+00> : vector<18x18xf32>
    %2 = vector.multi_reduction <add>, %1, %cst [0] : vector<4x18x18xf32> to vector<18x18xf32>
    %cst_3 = arith.constant 0.000000e+00 : f32
    %3 = vector.broadcast %cst_3 : f32 to vector<16x16xf32>
    %c0_4 = arith.constant 0 : index
    %c0_5 = arith.constant 0 : index
    %4 = memref.load %arg4[%c0_4, %c0_5] : memref<3x3xf32, #tpu.memory_space<smem>>
    %5 = vector.extract_strided_slice %2 {offsets = [0, 0], sizes = [16, 16], strides = [1, 1]} : vector<18x18xf32> to vector<16x16xf32>
    %6 = vector.broadcast %4 : f32 to vector<16x16xf32>
    %7 = arith.mulf %6, %5 : vector<16x16xf32>
    %8 = arith.addf %3, %7 : vector<16x16xf32>
    %c0_6 = arith.constant 0 : index
    %c1 = arith.constant 1 : index
    %9 = memref.load %arg4[%c0_6, %c1] : memref<3x3xf32, #tpu.memory_space<smem>>
    %10 = vector.extract_strided_slice %2 {offsets = [0, 1], sizes = [16, 16], strides = [1, 1]} : vector<18x18xf32> to vector<16x16xf32>
    %11 = vector.broadcast %9 : f32 to vector<16x16xf32>
    %12 = arith.mulf %11, %10 : vector<16x16xf32>
    %13 = arith.addf %8, %12 : vector<16x16xf32>
    %c0_7 = arith.constant 0 : index
    %c2 = arith.constant 2 : index
    %14 = memref.load %arg4[%c0_7, %c2] : memref<3x3xf32, #tpu.memory_space<smem>>
    %15 = vector.extract_strided_slice %2 {offsets = [0, 2], sizes = [16, 16], strides = [1, 1]} : vector<18x18xf32> to vector<16x16xf32>
    %16 = vector.broadcast %14 : f32 to vector<16x16xf32>
    %17 = arith.mulf %16, %15 : vector<16x16xf32>
    %18 = arith.addf %13, %17 : vector<16x16xf32>
    %c1_8 = arith.constant 1 : index
    %c0_9 = arith.constant 0 : index
    %19 = memref.load %arg4[%c1_8, %c0_9] : memref<3x3xf32, #tpu.memory_space<smem>>
    %20 = vector.extract_strided_slice %2 {offsets = [1, 0], sizes = [16, 16], strides = [1, 1]} : vector<18x18xf32> to vector<16x16xf32>
    %21 = vector.broadcast %19 : f32 to vector<16x16xf32>
    %22 = arith.mulf %21, %20 : vector<16x16xf32>
    %23 = arith.addf %18, %22 : vector<16x16xf32>
    %c1_10 = arith.constant 1 : index
    %c1_11 = arith.constant 1 : index
    %24 = memref.load %arg4[%c1_10, %c1_11] : memref<3x3xf32, #tpu.memory_space<smem>>
    %25 = vector.extract_strided_slice %2 {offsets = [1, 1], sizes = [16, 16], strides = [1, 1]} : vector<18x18xf32> to vector<16x16xf32>
    %26 = vector.broadcast %24 : f32 to vector<16x16xf32>
    %27 = arith.mulf %26, %25 : vector<16x16xf32>
    %28 = arith.addf %23, %27 : vector<16x16xf32>
    %c1_12 = arith.constant 1 : index
    %c2_13 = arith.constant 2 : index
    %29 = memref.load %arg4[%c1_12, %c2_13] : memref<3x3xf32, #tpu.memory_space<smem>>
    %30 = vector.extract_strided_slice %2 {offsets = [1, 2], sizes = [16, 16], strides = [1, 1]} : vector<18x18xf32> to vector<16x16xf32>
    %31 = vector.broadcast %29 : f32 to vector<16x16xf32>
    %32 = arith.mulf %31, %30 : vector<16x16xf32>
    %33 = arith.addf %28, %32 : vector<16x16xf32>
    %c2_14 = arith.constant 2 : index
    %c0_15 = arith.constant 0 : index
    %34 = memref.load %arg4[%c2_14, %c0_15] : memref<3x3xf32, #tpu.memory_space<smem>>
    %35 = vector.extract_strided_slice %2 {offsets = [2, 0], sizes = [16, 16], strides = [1, 1]} : vector<18x18xf32> to vector<16x16xf32>
    %36 = vector.broadcast %34 : f32 to vector<16x16xf32>
    %37 = arith.mulf %36, %35 : vector<16x16xf32>
    %38 = arith.addf %33, %37 : vector<16x16xf32>
    %c2_16 = arith.constant 2 : index
    %c1_17 = arith.constant 1 : index
    %39 = memref.load %arg4[%c2_16, %c1_17] : memref<3x3xf32, #tpu.memory_space<smem>>
    %40 = vector.extract_strided_slice %2 {offsets = [2, 1], sizes = [16, 16], strides = [1, 1]} : vector<18x18xf32> to vector<16x16xf32>
    %41 = vector.broadcast %39 : f32 to vector<16x16xf32>
    %42 = arith.mulf %41, %40 : vector<16x16xf32>
    %43 = arith.addf %38, %42 : vector<16x16xf32>
    %c2_18 = arith.constant 2 : index
    %c2_19 = arith.constant 2 : index
    %44 = memref.load %arg4[%c2_18, %c2_19] : memref<3x3xf32, #tpu.memory_space<smem>>
    %45 = vector.extract_strided_slice %2 {offsets = [2, 2], sizes = [16, 16], strides = [1, 1]} : vector<18x18xf32> to vector<16x16xf32>
    %46 = vector.broadcast %44 : f32 to vector<16x16xf32>
    %47 = arith.mulf %46, %45 : vector<16x16xf32>
    %48 = arith.addf %43, %47 : vector<16x16xf32>
    %c0_20 = arith.constant 0 : index
    %49 = memref.load %arg5[%c0_20] : memref<2xf32, #tpu.memory_space<smem>>
    %50 = vector.broadcast %49 : f32 to vector<16x16xf32>
    %51 = arith.addf %48, %50 : vector<16x16xf32>
    %cst_21 = arith.constant 0.000000e+00 : f32
    %cst_22 = arith.constant 6.000000e+00 : f32
    %52 = vector.broadcast %cst_21 : f32 to vector<16x16xf32>
    %53 = arith.maximumf %52, %51 : vector<16x16xf32>
    %54 = vector.broadcast %cst_22 : f32 to vector<16x16xf32>
    %55 = arith.minimumf %54, %53 : vector<16x16xf32>
    %c0_23 = arith.constant 0 : index
    %c0_24 = arith.constant 0 : index
    %56 = vector.load %arg2[%c0_23, %c0_24] : memref<16x16xf32, #tpu.memory_space<vmem>>, vector<16x16xf32>
    %cst_25 = arith.constant dense<0.000000e+00> : vector<16x16xf32>
    %57 = tpu.matmul %56, %55, %cst_25 {dimension_numbers = #tpu.dot_dimension_numbers<[1], [0], [0], [1], [0, 0, 1, 1], [], []>} : vector<16x16xf32>, vector<16x16xf32>, vector<16x16xf32> -> vector<16x16xf32>
    %c0_26 = arith.constant 0 : index
    %c0_27 = arith.constant 0 : index
    %58 = vector.load %arg3[%c0_26, %c0_27] : memref<16x16xf32, #tpu.memory_space<vmem>>, vector<16x16xf32>
    %cst_28 = arith.constant dense<0.000000e+00> : vector<16x16xf32>
    %59 = tpu.matmul %57, %58, %cst_28 {dimension_numbers = #tpu.dot_dimension_numbers<[1], [0], [0], [1], [0, 0, 1, 1], [], []>} : vector<16x16xf32>, vector<16x16xf32>, vector<16x16xf32> -> vector<16x16xf32>
    %c1_29 = arith.constant 1 : index
    %60 = memref.load %arg5[%c1_29] : memref<2xf32, #tpu.memory_space<smem>>
    %61 = vector.broadcast %60 : f32 to vector<16x16xf32>
    %62 = arith.addf %59, %61 : vector<16x16xf32>
    %cst_30 = arith.constant 0.000000e+00 : f32
    %cst_31 = arith.constant 6.000000e+00 : f32
    %63 = vector.broadcast %cst_30 : f32 to vector<16x16xf32>
    %64 = arith.maximumf %63, %62 : vector<16x16xf32>
    %65 = vector.broadcast %cst_31 : f32 to vector<16x16xf32>
    %66 = arith.minimumf %65, %64 : vector<16x16xf32>
    %c0_32 = arith.constant 0 : index
    %c0_33 = arith.constant 0 : index
    %c0_34 = arith.constant 0 : index
    %67 = vector.load %arg6[%c0_32, %c0_33, %c0_34] : memref<1x16x16xf32, #tpu.memory_space<vmem>>, vector<1x16x16xf32>
    %68 = vector.shape_cast %67 : vector<1x16x16xf32> to vector<16x16xf32>
    %69 = vector.shape_cast %66 : vector<16x16xf32> to vector<1x16x16xf32>
    tpu.vector_store %arg6[%c0_32, %c0_33, %c0_34], %69 {strides = array<i32>} : memref<1x16x16xf32, #tpu.memory_space<vmem>>, vector<1x16x16xf32>,
    return
  }
  func.func @transform_0(%arg0: i32) -> (i32, i32, i32, i32) {
    %c0_i32 = arith.constant 0 : i32
    %c0_i32_0 = arith.constant 0 : i32
    %c0_i32_1 = arith.constant 0 : i32
    %c0_i32_2 = arith.constant 0 : i32
    return %arg0, %c0_i32, %c0_i32_0, %c0_i32_1 : i32, i32, i32, i32
  }
  func.func @transform_1(%arg0: i32) -> (i32, i32) {
    %c0_i32 = arith.constant 0 : i32
    %c0_i32_0 = arith.constant 0 : i32
    %c0_i32_1 = arith.constant 0 : i32
    return %c0_i32, %c0_i32_0 : i32, i32
  }
  func.func @transform_2(%arg0: i32) -> (i32, i32) {
    %c0_i32 = arith.constant 0 : i32
    %c0_i32_0 = arith.constant 0 : i32
    %c0_i32_1 = arith.constant 0 : i32
    return %c0_i32, %c0_i32_0 : i32, i32
  }
  func.func @transform_3(%arg0: i32) -> (i32, i32) {
    %c0_i32 = arith.constant 0 : i32
    %c0_i32_0 = arith.constant 0 : i32
    %c0_i32_1 = arith.constant 0 : i32
    return %c0_i32, %c0_i32_0 : i32, i32
  }
  func.func @transform_4(%arg0: i32) -> i32 {
    %c0_i32 = arith.constant 0 : i32
    %c0_i32_0 = arith.constant 0 : i32
    return %c0_i32 : i32
  }
  func.func @transform_5(%arg0: i32) -> (i32, i32, i32) {
    %c0_i32 = arith.constant 0 : i32
    %c0_i32_0 = arith.constant 0 : i32
    %c0_i32_1 = arith.constant 0 : i32
    return %arg0, %c0_i32, %c0_i32_0 : i32, i32, i32
  }
}

</mosaic_0001>

<llo_original>
// kernel: tpu_custom_call.1
$region0: #{tpu_custom_call.1}
  #allocation0 [shape = 'u32[]', space=smem, size = 0x4, offset = 0x4, fixed_abs, tag = 'smem constant byte address 0x4 - core index']
  #allocation1 [shape = 'u32[144,128]{1,0:T(1,128)}', space=vmem, size = 0x12000, scoped, tag = 'internal scratch']
  %s0 = inlined_call_operand.vmem [shape: f32[2,4,18,18], index: 0, kind: input, shape index: {}]
  %s1 = inlined_call_operand.vmem [shape: f32[16,16], index: 1, kind: input, shape index: {}]
  %s2 = inlined_call_operand.vmem [shape: f32[16,16], index: 2, kind: input, shape index: {}]
  %s3 = inlined_call_operand.vmem [shape: f32[3,3], index: 3, kind: input, shape index: {}]
  %s4 = inlined_call_operand.vmem [shape: f32[2], index: 4, kind: input, shape index: {}]
  %s5 = inlined_call_operand.hbm [shape: f32[2,16,16], index: 5, kind: output, shape index: {}]
  %s6 = sld [smem:[#allocation0]]
  $region61: #{tpu_custom_call.1} parent=0
    _
  %s8 = ssub.s32 1, %s6
  %s9 = scalar_select 0, %s8, %s6
  $region1: #{tpu_custom_call.1} parent=0
    #allocation2 [shape = 'u8[2048]{0}', space=smem, size = 0x800, scoped, tag = 'input window, operand 3, single buffered']
    #allocation3 [shape = 's32[2]{0}', space=sflag, size = 0x8, scoped, tag = 'scoped memory for tpu_custom_call.1']
    #allocation4 [shape = 's32[2]{0}', space=sflag, size = 0x8, scoped, tag = 'scoped memory for tpu_custom_call.1']
    #allocation5 [shape = 'u8[512]{0}', space=smem, size = 0x200, scoped, tag = 'input window, operand 4, single buffered']
    #allocation6 [shape = 's32[1]{0}', space=sflag, size = 0x4, scoped, tag = 'scoped memory for tpu_custom_call.1']
    #allocation7 [shape = 'u8[16384]{0}', space=vmem, size = 0x4000, scoped, tag = 'output window, operand 0']
    %10 = vsyncpa [#allocation4], 0
    %11 = vsyncpa [#allocation6], 0
    %12 = vsyncpa [#allocation3], 0
    %s13 = scalar_lea.sflag [#allocation3], 1
    %14 = vsyncpa %s13, 0
    loop: start=0, step=1, limit=4
    $region2: #{tpu_custom_call.1} parent=1 // loop_pre_header
      _
    $region3: #{tpu_custom_call.1} parent=1 // loop_header
      %s16 = sphi 0, %s20
      %p17 = scmp.ge.s32.totalorder %s16, 4
      %s26 = sphi 0, %s28
      %s29 = sphi 0, %s26
      %s30 = sphi 0, %s29
      %s46 = sphi 0, %s30
      %s50 = sphi 0, %s50
      %s52 = sphi 0, %s50
      %s53 = sphi 0, %s52
      %s67 = sphi 0, %s53
      %s71 = sphi 0, %s71
      %s73 = sphi 0, %s71
      %s74 = sphi 0, %s73
      %s88 = sphi 0, %s74
      %s92 = sphi 0, %s92
      %s94 = sphi 0, %s92
      %s95 = sphi 0, %s94
      %s109 = sphi 0, %s95
      %s113 = sphi 0, %s113
      %s115 = sphi 0, %s113
      %s116 = sphi 0, %s115
      %s130 = sphi 0, %s116
      %s136 = sphi 0, %s138
      %s139 = sphi 0, %s136
      %s140 = sphi 0, %s139
      %s156 = sphi 0, %s140
    $region4: #{tpu_custom_call.1} parent=1 // loop_header_branch
      %19 = sbr.rel (%p17) target = $region8
    $region5: #{tpu_custom_call.1} parent=1 // loop_body
      %s21 = ssub.s32 %s16, 1
      %s22 = ssub.s32 %s16, 2
      %s23 = sadd.s32 %s16, 1
      %s24 = ssub.s32 %s16, %s23
      %p25 = scmp.eq.s32.totalorder %s24, 0
      %s27 = sadd.s32 %s26, 1
      %s28 = scalar_select %p25, %s26, %s27
      %p31 = pneg %p25
      %p32 = scmp.eq.s32.totalorder %s16, 1
      %p33 = por %p31, %p32
      %p34 = scmp.ne.s32.totalorder %s26, %s29
      %p35 = scmp.eq.s32.totalorder %s16, 0
      %p36 = por %p34, %p35
      %p37 = scmp.ne.s32.totalorder %s26, %s29
      %p38 = scmp.eq.s32.totalorder %s21, 1
      %p39 = por %p37, %p38
      %p40 = scmp.ne.s32.totalorder %s29, %s30
      %p41 = scmp.eq.s32.totalorder %s21, 0
      %p42 = por %p40, %p41
      %p43 = scmp.ne.s32.totalorder %s29, %s30
      %p44 = scmp.eq.s32.totalorder %s22, 1
      %p45 = por %p43, %p44
      %p47 = scmp.ne.s32.totalorder %s30, %s46
      %p48 = scmp.eq.s32.totalorder %s22, 0
      %p49 = por %p47, %p48
      %s51 = sadd.s32 %s50, 1
      %p54 = scmp.eq.s32.totalorder %s16, 1
      %p55 = scmp.ne.s32.totalorder %s50, %s52
      %p56 = scmp.eq.s32.totalorder %s16, 0
      %p57 = por %p55, %p56
      %p58 = scmp.ne.s32.totalorder %s50, %s52
      %p59 = scmp.eq.s32.totalorder %s21, 1
      %p60 = por %p58, %p59
      %p61 = scmp.ne.s32.totalorder %s52, %s53
      %p62 = scmp.eq.s32.totalorder %s21, 0
      %p63 = por %p61, %p62
      %p64 = scmp.ne.s32.totalorder %s52, %s53
      %p65 = scmp.eq.s32.totalorder %s22, 1
      %p66 = por %p64, %p65
      %p68 = scmp.ne.s32.totalorder %s53, %s67
      %p69 = scmp.eq.s32.totalorder %s22, 0
      %p70 = por %p68, %p69
      %s72 = sadd.s32 %s71, 1
      %p75 = scmp.eq.s32.totalorder %s16, 1
      %p76 = scmp.ne.s32.totalorder %s71, %s73
      %p77 = scmp.eq.s32.totalorder %s16, 0
      %p78 = por %p76, %p77
      %p79 = scmp.ne.s32.totalorder %s71, %s73
      %p80 = scmp.eq.s32.totalorder %s21, 1
      %p81 = por %p79, %p80
      %p82 = scmp.ne.s32.totalorder %s73, %s74
      %p83 = scmp.eq.s32.totalorder %s21, 0
      %p84 = por %p82, %p83
      %p85 = scmp.ne.s32.totalorder %s73, %s74
      %p86 = scmp.eq.s32.totalorder %s22, 1
      %p87 = por %p85, %p86
      %p89 = scmp.ne.s32.totalorder %s74, %s88
      %p90 = scmp.eq.s32.totalorder %s22, 0
      %p91 = por %p89, %p90
      %s93 = sadd.s32 %s92, 1
      %p96 = scmp.eq.s32.totalorder %s16, 1
      %p97 = scmp.ne.s32.totalorder %s92, %s94
      %p98 = scmp.eq.s32.totalorder %s16, 0
      %p99 = por %p97, %p98
      %p100 = scmp.ne.s32.totalorder %s92, %s94
      %p101 = scmp.eq.s32.totalorder %s21, 1
      %p102 = por %p100, %p101
      %p103 = scmp.ne.s32.totalorder %s94, %s95
      %p104 = scmp.eq.s32.totalorder %s21, 0
      %p105 = por %p103, %p104
      %p106 = scmp.ne.s32.totalorder %s94, %s95
      %p107 = scmp.eq.s32.totalorder %s22, 1
      %p108 = por %p106, %p107
      %p110 = scmp.ne.s32.totalorder %s95, %s109
      %p111 = scmp.eq.s32.totalorder %s22, 0
      %p112 = por %p110, %p111
      %s114 = sadd.s32 %s113, 1
      %p117 = scmp.eq.s32.totalorder %s16, 1
      %p118 = scmp.ne.s32.totalorder %s113, %s115
      %p119 = scmp.eq.s32.totalorder %s16, 0
      %p120 = por %p118, %p119
      %p121 = scmp.ne.s32.totalorder %s113, %s115
      %p122 = scmp.eq.s32.totalorder %s21, 1
      %p123 = por %p121, %p122
      %p124 = scmp.ne.s32.totalorder %s115, %s116
      %p125 = scmp.eq.s32.totalorder %s21, 0
      %p126 = por %p124, %p125
      %p127 = scmp.ne.s32.totalorder %s115, %s116
      %p128 = scmp.eq.s32.totalorder %s22, 1
      %p129 = por %p127, %p128
      %p131 = scmp.ne.s32.totalorder %s116, %s130
      %p132 = scmp.eq.s32.totalorder %s22, 0
      %p133 = por %p131, %p132
      %s134 = ssub.s32 %s16, %s23
      %p135 = scmp.eq.s32.totalorder %s134, 0
      %s137 = sadd.s32 %s136, 1
      %s138 = scalar_select %p135, %s136, %s137
      %p141 = pneg %p135
      %p142 = scmp.eq.s32.totalorder %s16, 1
      %p143 = por %p141, %p142
      %p144 = scmp.ne.s32.totalorder %s136, %s139
      %p145 = scmp.eq.s32.totalorder %s16, 0
      %p146 = por %p144, %p145
      %p147 = scmp.ne.s32.totalorder %s136, %s139
      %p148 = scmp.eq.s32.totalorder %s21, 1
      %p149 = por %p147, %p148
      %p150 = scmp.ne.s32.totalorder %s139, %s140
      %p151 = scmp.eq.s32.totalorder %s21, 0
      %p152 = por %p150, %p151
      %p153 = scmp.ne.s32.totalorder %s139, %s140
      %p154 = scmp.eq.s32.totalorder %s22, 1
      %p155 = por %p153, %p154
      %p157 = scmp.ne.s32.totalorder %s140, %s156
      %p158 = scmp.eq.s32.totalorder %s22, 0
      %p159 = por %p157, %p158
      %p160 = scmp.le.s32.totalorder 1, %s16
      %p161 = scmp.lt.s32.totalorder %s16, 3
      %p162 = pnand %p160, %p161
      %p163 = pneg %p162
      // Predicated region
      $region9: #{tpu_custom_call.1} parent=5 // pred_check
        _
      $region10: #{tpu_custom_call.1} parent=5 // pred_check_branch
        %165 = sbr.rel (%p162) target = $region12
      $region11: #{tpu_custom_call.1} parent=5 // pred_region
        %s166 = ssub.s32 %s16, 1
        // Predicated region
        $region13: #{tpu_custom_call.1} parent=11 // pred_check
          %p167 = pneg %p63
        $region14: #{tpu_custom_call.1} parent=11 // pred_check_branch
          %169 = sbr.rel (%p167) target = $region16
        $region15: #{tpu_custom_call.1} parent=11 // pred_region
          _
        $region16: #{tpu_custom_call.1} parent=11 // pred_fallthru
          _
        // Predicated region
        $region17: #{tpu_custom_call.1} parent=11 // pred_check
          %p170 = pneg %p84
        $region18: #{tpu_custom_call.1} parent=11 // pred_check_branch
          %172 = sbr.rel (%p170) target = $region20
        $region19: #{tpu_custom_call.1} parent=11 // pred_region
          _
        $region20: #{tpu_custom_call.1} parent=11 // pred_fallthru
          _
        // Predicated region
        $region21: #{tpu_custom_call.1} parent=11 // pred_check
          %p173 = pneg %p105
        $region22: #{tpu_custom_call.1} parent=11 // pred_check_branch
          %175 = sbr.rel (%p173) target = $region24
        $region23: #{tpu_custom_call.1} parent=11 // pred_region
          %s177 = ssub.s32 64, 64
          %178 = vsyncadd [#allocation4], %s177
          %s180 = sshll.u32 %s3, 4
          %s181 = int_to_ptr.vmem [resolvable:$true] %s180
          %183 = dma.vmem_to_smem %s181, 64, [#allocation2], [#allocation4]
        $region24: #{tpu_custom_call.1} parent=11 // pred_fallthru
          _
        // Predicated region
        $region25: #{tpu_custom_call.1} parent=11 // pred_check
          %p184 = pneg %p126
        $region26: #{tpu_custom_call.1} parent=11 // pred_check_branch
          %186 = sbr.rel (%p184) target = $region28
        $region27: #{tpu_custom_call.1} parent=11 // pred_region
          %s188 = ssub.s32 16, 16
          %189 = vsyncadd [#allocation6], %s188
          %s191 = sshll.u32 %s4, 4
          %s192 = int_to_ptr.vmem [resolvable:$true] %s191
          %194 = dma.vmem_to_smem %s192, 16, [#allocation5], [#allocation6]
        $region28: #{tpu_custom_call.1} parent=11 // pred_fallthru
          _
      $region12: #{tpu_custom_call.1} parent=5 // pred_fallthru
        _
      %p195 = scmp.lt.s32.totalorder %s16, 2
      // Predicated region
      $region29: #{tpu_custom_call.1} parent=5 // pred_check
        %p196 = pneg %p195
      $region30: #{tpu_custom_call.1} parent=5 // pred_check_branch
        %198 = sbr.rel (%p196) target = $region32
      $region31: #{tpu_custom_call.1} parent=5 // pred_region
        // Predicated region
        $region33: #{tpu_custom_call.1} parent=31 // pred_check
          %p199 = pneg %p36
        $region34: #{tpu_custom_call.1} parent=31 // pred_check_branch
          %201 = sbr.rel (%p199) target = $region36
        $region35: #{tpu_custom_call.1} parent=31 // pred_region
          %p202 = scmp.lt.s32.totalorder %s16, 1
          %s203 = scalar_select %p202, %s16, 1
          %s204 = smul.addr %s203, 12
          %s205 = smul.addr %s204, 8
          %s206 = scalar_lea.vmem %s0, %s205
        $region36: #{tpu_custom_call.1} parent=31 // pred_fallthru
          _
      $region32: #{tpu_custom_call.1} parent=5 // pred_fallthru
        _
      %p207 = scmp.le.s32.totalorder 1, %s16
      %p208 = scmp.lt.s32.totalorder %s16, 3
      %p209 = pnand %p207, %p208
      %p210 = pneg %p209
      // Predicated region
      $region37: #{tpu_custom_call.1} parent=5 // pred_check
        _
      $region38: #{tpu_custom_call.1} parent=5 // pred_check_branch
        %212 = sbr.rel (%p209) target = $region40
      $region39: #{tpu_custom_call.1} parent=5 // pred_region
        %s213 = ssub.s32 %s16, 1
        // Predicated region
        $region41: #{tpu_custom_call.1} parent=39 // pred_check
          %p214 = pneg %p105
        $region42: #{tpu_custom_call.1} parent=39 // pred_check_branch
          %216 = sbr.rel (%p214) target = $region44
        $region43: #{tpu_custom_call.1} parent=39 // pred_region
          %217 = dma.done [#allocation4], 64
        $region44: #{tpu_custom_call.1} parent=39 // pred_fallthru
          _
        // Predicated region
        $region45: #{tpu_custom_call.1} parent=39 // pred_check
          %p218 = pneg %p126
        $region46: #{tpu_custom_call.1} parent=39 // pred_check_branch
          %220 = sbr.rel (%p218) target = $region48
        $region47: #{tpu_custom_call.1} parent=39 // pred_region
          %221 = dma.done [#allocation6], 16
        $region48: #{tpu_custom_call.1} parent=39 // pred_fallthru
          _
        %222 = sfence
        %p223 = scmp.lt.s32.totalorder %s21, 1
        %s224 = scalar_select %p223, %s21, 1
        %s225 = smul.addr %s224, 12
        %s226 = smul.addr %s225, 8
        %s227 = scalar_lea.vmem %s0, %s226
        %p228 = pneg %p42
        %p229 = pneg %p39
        %p230 = pneg %p63
        %p231 = pneg %p60
        %p232 = pneg %p84
        %p233 = pneg %p81
        %p234 = pneg %p105
        %p235 = pneg %p102
        %p236 = pneg %p126
        %p237 = pneg %p123
        %p238 = pneg %p152
        %p239 = pneg %p149
        %s240 = sand.u32 %s139, 1
        %s241 = scalar_lea.sflag [#allocation3], %s240
        %s242 = sand.u32 %s139, 1
        %s243 = smul.addr %s242, 16
        %s244 = scalar_lea.vmem [#allocation7], %s243
        %p245 = scmp.lt.s32.totalorder %s21, 1
        %s246 = scalar_select %p245, %s21, 1
        %s247 = smul.addr %s246, 12
        %s248 = smul.addr %s247, 8
        %s249 = scalar_lea.vmem %s0, %s248
        %v250 = vld [vmem:[%s249] sm:$0xff]
        %v251 = vld [vmem:[%s249 + $0x8] sm:$0xff]
        %v252 = vld [vmem:[%s249 + $0x10] sm:$0x3]
        %v253 = vld [vmem:[%s249 + $0x18] sm:$0xff]
        %v254 = vld [vmem:[%s249 + $0x20] sm:$0xff]
        %v255 = vld [vmem:[%s249 + $0x28] sm:$0x3]
        %v256 = vld [vmem:[%s249 + $0x30] sm:$0xff]
        %v257 = vld [vmem:[%s249 + $0x38] sm:$0xff]
        %v258 = vld [vmem:[%s249 + $0x40] sm:$0x3]
        %v259 = vld [vmem:[%s249 + $0x48] sm:$0xff]
        %v260 = vld [vmem:[%s249 + $0x50] sm:$0xff]
        %v261 = vld [vmem:[%s249 + $0x58] sm:$0x3]
        %vm262 = vcmask 146432
        %v263 = vsel %vm262, %v250, 0.0
        %v264 = vsel %vm262, %v253, 0.0
        %v265 = vadd.f32 %v263, %v264
        %v266 = vsel %vm262, %v256, 0.0
        %v267 = vadd.f32 %v265, %v266
        %v268 = vsel %vm262, %v259, 0.0
        %v269 = vadd.f32 %v267, %v268
        %v270 = vsel %vm262, %v251, 0.0
        %v271 = vsel %vm262, %v254, 0.0
        %v272 = vadd.f32 %v270, %v271
        %v273 = vsel %vm262, %v257, 0.0
        %v274 = vadd.f32 %v272, %v273
        %v275 = vsel %vm262, %v260, 0.0
        %v276 = vadd.f32 %v274, %v275
        %vm277 = vcmask 140288
        %v278 = vsel %vm277, %v252, 0.0
        %v279 = vsel %vm277, %v255, 0.0
        %v280 = vadd.f32 %v278, %v279
        %v281 = vsel %vm277, %v258, 0.0
        %v282 = vadd.f32 %v280, %v281
        %v283 = vsel %vm277, %v261, 0.0
        %v284 = vadd.f32 %v282, %v283
        %s285 = sld [smem:[#allocation2]]
        %v286 = vstv %s285
        %v287 = vmul.f32 %v286, %v269
        %v288 = vmul.f32 %v286, %v276
        %v289 = vadd.f32 %v287, 0.0
        %v290 = vadd.f32 %v288, 0.0
        %s291 = sld [smem:[#allocation2 + $0x1]]
        %v292 = vstv %s291
        %v293 = vmul.f32 %v292, %v269
        %v294 = vmul.f32 %v292, %v276
        %297 = vrot.lane.b32.xlu0 %v293, 127
        %v298 = vpop.permute.xlu0 %297
        %299 = vrot.lane.b32.xlu0 %v294, 127
        %v300 = vpop.permute.xlu0 %299
        %v303 = vadd.f32 %v289, %v298
        %v304 = vadd.f32 %v290, %v300
        %s305 = sld [smem:[#allocation2 + $0x2]]
        %v306 = vstv %s305
        %v307 = vmul.f32 %v306, %v269
        %v308 = vmul.f32 %v306, %v276
        %311 = vrot.lane.b32.xlu0 %v307, 126
        %v312 = vpop.permute.xlu0 %311
        %313 = vrot.lane.b32.xlu0 %v308, 126
        %v314 = vpop.permute.xlu0 %313
        %v317 = vadd.f32 %v303, %v312
        %v318 = vadd.f32 %v304, %v314
        %s319 = sld [smem:[#allocation2 + $0x80]]
        %v320 = vstv %s319
        %v321 = vmul.f32 %v320, %v269
        %v322 = vmul.f32 %v320, %v276
        %v323 = vmul.f32 %v320, %v284
        %vm327 = vcmask 1046528
        %v328 = vrot.slane %v321, 1
        %v329 = vrot.slane %v322, 1
        %v330 = vsel %vm327, %v328, %v329
        %v331 = vrot.slane %v323, 1
        %v332 = vsel %vm327, %v329, %v331
        %v335 = vadd.f32 %v317, %v330
        %v336 = vadd.f32 %v318, %v332
        %s337 = sld [smem:[#allocation2 + $0x81]]
        %v338 = vstv %s337
        %v339 = vmul.f32 %v338, %v269
        %v340 = vmul.f32 %v338, %v276
        %v341 = vmul.f32 %v338, %v284
        %v345 = vrot.slane %v339, 1
        %v346 = vrot.slane %v340, 1
        %v347 = vsel %vm327, %v345, %v346
        %v348 = vrot.slane %v341, 1
        %v349 = vsel %vm327, %v346, %v348
        %350 = vrot.lane.b32.xlu0 %v347, 127
        %v351 = vpop.permute.xlu0 %350
        %352 = vrot.lane.b32.xlu0 %v349, 127
        %v353 = vpop.permute.xlu0 %352
        %v356 = vadd.f32 %v335, %v351
        %v357 = vadd.f32 %v336, %v353
        %s358 = sld [smem:[#allocation2 + $0x82]]
        %v359 = vstv %s358
        %v360 = vmul.f32 %v359, %v269
        %v361 = vmul.f32 %v359, %v276
        %v362 = vmul.f32 %v359, %v284
        %v366 = vrot.slane %v360, 1
        %v367 = vrot.slane %v361, 1
        %v368 = vsel %vm327, %v366, %v367
        %v369 = vrot.slane %v362, 1
        %v370 = vsel %vm327, %v367, %v369
        %371 = vrot.lane.b32.xlu0 %v368, 126
        %v372 = vpop.permute.xlu0 %371
        %373 = vrot.lane.b32.xlu0 %v370, 126
        %v374 = vpop.permute.xlu0 %373
        %v377 = vadd.f32 %v356, %v372
        %v378 = vadd.f32 %v357, %v374
        %s379 = sld [smem:[#allocation2 + $0x100]]
        %v380 = vstv %s379
        %v381 = vmul.f32 %v380, %v269
        %v382 = vmul.f32 %v380, %v276
        %v383 = vmul.f32 %v380, %v284
        %vm387 = vcmask 1045504
        %v388 = vrot.slane %v381, 2
        %v389 = vrot.slane %v382, 2
        %v390 = vsel %vm387, %v388, %v389
        %v391 = vrot.slane %v383, 2
        %v392 = vsel %vm387, %v389, %v391
        %v395 = vadd.f32 %v377, %v390
        %v396 = vadd.f32 %v378, %v392
        %s397 = sld [smem:[#allocation2 + $0x101]]
        %v398 = vstv %s397
        %v399 = vmul.f32 %v398, %v269
        %v400 = vmul.f32 %v398, %v276
        %v401 = vmul.f32 %v398, %v284
        %v405 = vrot.slane %v399, 2
        %v406 = vrot.slane %v400, 2
        %v407 = vsel %vm387, %v405, %v406
        %v408 = vrot.slane %v401, 2
        %v409 = vsel %vm387, %v406, %v408
        %410 = vrot.lane.b32.xlu0 %v407, 127
        %v411 = vpop.permute.xlu0 %410
        %412 = vrot.lane.b32.xlu0 %v409, 127
        %v413 = vpop.permute.xlu0 %412
        %v416 = vadd.f32 %v395, %v411
        %v417 = vadd.f32 %v396, %v413
        %s418 = sld [smem:[#allocation2 + $0x102]]
        %v419 = vstv %s418
        %v420 = vmul.f32 %v419, %v269
        %v421 = vmul.f32 %v419, %v276
        %v422 = vmul.f32 %v419, %v284
        %v426 = vrot.slane %v420, 2
        %v427 = vrot.slane %v421, 2
        %v428 = vsel %vm387, %v426, %v427
        %v429 = vrot.slane %v422, 2
        %v430 = vsel %vm387, %v427, %v429
        %431 = vrot.lane.b32.xlu0 %v428, 126
        %v432 = vpop.permute.xlu0 %431
        %433 = vrot.lane.b32.xlu0 %v430, 126
        %v434 = vpop.permute.xlu0 %433
        %v437 = vadd.f32 %v416, %v432
        %v438 = vadd.f32 %v417, %v434
        %s439 = sld [smem:[#allocation5]]
        %v440 = vstv %s439
        %v441 = vadd.f32 %v437, %v440
        %v442 = vadd.f32 %v438, %v440
        %v443 = vmax.f32 %v441, 0.0
        %v444 = vmax.f32 %v442, 0.0
        %v445 = vmin.f32 %v443, 6.0
        %v446 = vmin.f32 %v444, 6.0
        %v447 = vld [vmem:[%s1] sm:$0xff]
        %v448 = vld [vmem:[%s1 + $0x8] sm:$0xff]
        %vm449 = vcmask 130048
        %v451 = vsel %vm449, %v447, 0
        %v454 = vsel %vm449, %v448, 0
        %456 = vmatprep.subr.mxu0 0.0
        %457 = vmatpush1.msra.mxu0 %v445
        %458 = vmatprep.subr.mxu0 0.0
        %459 = vmatpush1.msra.mxu0 %v446
        %460 = vmatprep.subr.mxu0 0.0
        %461 = vmatpush1.msra.mxu0 0.0
        %462 = vmatprep.subr.mxu0 0.0
        %463 = vmatpush1.msra.mxu0 0.0
        %464 = vmatprep.subr.mxu0 0.0
        %465 = vmatpush1.msra.mxu0 0.0
        %466 = vmatprep.subr.mxu0 0.0
        %467 = vmatpush1.msra.mxu0 0.0
        %468 = vmatprep.subr.mxu0 0.0
        %469 = vmatpush1.msra.mxu0 0.0
        %470 = vmatprep.subr.mxu0 0.0
        %471 = vmatpush1.msra.mxu0 0.0
        %472 = vmatprep.subr.mxu0 0.0
        %473 = vmatpush1.msra.mxu0 0.0
        %474 = vmatprep.subr.mxu0 0.0
        %475 = vmatpush1.msra.mxu0 0.0
        %476 = vmatprep.subr.mxu0 0.0
        %477 = vmatpush1.msra.mxu0 0.0
        %478 = vmatprep.subr.mxu0 0.0
        %479 = vmatpush1.msra.mxu0 0.0
        %480 = vmatprep.subr.mxu0 0.0
        %481 = vmatpush1.msra.mxu0 0.0
        %482 = vmatprep.subr.mxu0 0.0
        %483 = vmatpush1.msra.mxu0 0.0
        %484 = vmatprep.subr.mxu0 0.0
        %485 = vmatpush1.msra.mxu0 0.0
        %486 = vmatprep.subr.mxu0 0.0
        %487 = vmatpush1.msra.mxu0 0.0
        %488 = vmatprep.subr.mxu0 0.0
        %489 = vmatpush1.msra.mxu0 0.0
        %490 = vmatprep.subr.mxu0 0.0
        %491 = vmatpush1.msra.mxu0 0.0
        %492 = vmatprep.subr.mxu0 0.0
        %493 = vmatpush1.msra.mxu0 0.0
        %494 = vmatprep.subr.mxu0 0.0
        %495 = vmatpush1.msra.mxu0 0.0
        %496 = vmatprep.subr.mxu0 0.0
        %497 = vmatpush1.msra.mxu0 0.0
        %498 = vmatprep.subr.mxu0 0.0
        %499 = vmatpush1.msra.mxu0 0.0
        %500 = vmatprep.subr.mxu0 0.0
        %501 = vmatpush1.msra.mxu0 0.0
        %502 = vmatprep.subr.mxu0 0.0
        %503 = vmatpush1.msra.mxu0 0.0
        %504 = vmatprep.subr.mxu0 0.0
        %505 = vmatpush1.msra.mxu0 0.0
        %506 = vmatprep.subr.mxu0 0.0
        %507 = vmatpush1.msra.mxu0 0.0
        %508 = vmatprep.subr.mxu0 0.0
        %509 = vmatpush1.msra.mxu0 0.0
        %510 = vmatprep.subr.mxu0 0.0
        %511 = vmatpush1.msra.mxu0 0.0
        %512 = vmatprep.subr.mxu0 0.0
        %513 = vmatpush1.msra.mxu0 0.0
        %514 = vmatprep.subr.mxu0 0.0
        %515 = vmatpush1.msra.mxu0 0.0
        %516 = vmatprep.subr.mxu0 0.0
        %517 = vmatpush1.msra.mxu0 0.0
        %518 = vmatprep.subr.mxu0 0.0
        %519 = vmatpush1.msra.mxu0 0.0
        %520 = vmatprep.mubr.f32.mxu0 0.0
        %521 = vmatmul.mubr.f32.gmra.mrb[0].mxu0 %v451
        %v522 = vpop.f32.mrb[0].mxu0
        %v523 = vadd.f32 0.0, %v522
        %v524 = vpop.f32.mrb[0].mxu0
        %525 = vmatprep.mubr.f32.mxu0 0.0
        %526 = vmatmul.mubr.f32.gmra.mrb[0].mxu0 %v454
        %v527 = vpop.f32.mrb[0].mxu0
        %v528 = vadd.f32 0.0, %v527
        %v529 = vpop.f32.mrb[0].mxu0
        %530 = vdwg.mxu0
        %v531 = vld [vmem:[%s2] sm:$0xff]
        %v532 = vld [vmem:[%s2 + $0x8] sm:$0xff]
        %s533 = sld [smem:[#allocation5 + $0x1]]
        %v534 = vstv %s533
        %v536 = vsel %vm449, %v523, 0
        %v539 = vsel %vm449, %v528, 0
        %541 = vmatprep.subr.mxu0 0.0
        %542 = vmatpush1.msra.mxu0 %v531
        %543 = vmatprep.subr.mxu0 0.0
        %544 = vmatpush1.msra.mxu0 %v532
        %545 = vmatprep.subr.mxu0 0.0
        %546 = vmatpush1.msra.mxu0 0.0
        %547 = vmatprep.subr.mxu0 0.0
        %548 = vmatpush1.msra.mxu0 0.0
        %549 = vmatprep.subr.mxu0 0.0
        %550 = vmatpush1.msra.mxu0 0.0
        %551 = vmatprep.subr.mxu0 0.0
        %552 = vmatpush1.msra.mxu0 0.0
        %553 = vmatprep.subr.mxu0 0.0
        %554 = vmatpush1.msra.mxu0 0.0
        %555 = vmatprep.subr.mxu0 0.0
        %556 = vmatpush1.msra.mxu0 0.0
        %557 = vmatprep.subr.mxu0 0.0
        %558 = vmatpush1.msra.mxu0 0.0
        %559 = vmatprep.subr.mxu0 0.0
        %560 = vmatpush1.msra.mxu0 0.0
        %561 = vmatprep.subr.mxu0 0.0
        %562 = vmatpush1.msra.mxu0 0.0
        %563 = vmatprep.subr.mxu0 0.0
        %564 = vmatpush1.msra.mxu0 0.0
        %565 = vmatprep.subr.mxu0 0.0
        %566 = vmatpush1.msra.mxu0 0.0
        %567 = vmatprep.subr.mxu0 0.0
        %568 = vmatpush1.msra.mxu0 0.0
        %569 = vmatprep.subr.mxu0 0.0
        %570 = vmatpush1.msra.mxu0 0.0
        %571 = vmatprep.subr.mxu0 0.0
        %572 = vmatpush1.msra.mxu0 0.0
        %573 = vmatprep.subr.mxu0 0.0
        %574 = vmatpush1.msra.mxu0 0.0
        %575 = vmatprep.subr.mxu0 0.0
        %576 = vmatpush1.msra.mxu0 0.0
        %577 = vmatprep.subr.mxu0 0.0
        %578 = vmatpush1.msra.mxu0 0.0
        %579 = vmatprep.subr.mxu0 0.0
        %580 = vmatpush1.msra.mxu0 0.0
        %581 = vmatprep.subr.mxu0 0.0
        %582 = vmatpush1.msra.mxu0 0.0
        %583 = vmatprep.subr.mxu0 0.0
        %584 = vmatpush1.msra.mxu0 0.0
        %585 = vmatprep.subr.mxu0 0.0
        %586 = vmatpush1.msra.mxu0 0.0
        %587 = vmatprep.subr.mxu0 0.0
        %588 = vmatpush1.msra.mxu0 0.0
        %589 = vmatprep.subr.mxu0 0.0
        %590 = vmatpush1.msra.mxu0 0.0
        %591 = vmatprep.subr.mxu0 0.0
        %592 = vmatpush1.msra.mxu0 0.0
        %593 = vmatprep.subr.mxu0 0.0
        %594 = vmatpush1.msra.mxu0 0.0
        %595 = vmatprep.subr.mxu0 0.0
        %596 = vmatpush1.msra.mxu0 0.0
        %597 = vmatprep.subr.mxu0 0.0
        %598 = vmatpush1.msra.mxu0 0.0
        %599 = vmatprep.subr.mxu0 0.0
        %600 = vmatpush1.msra.mxu0 0.0
        %601 = vmatprep.subr.mxu0 0.0
        %602 = vmatpush1.msra.mxu0 0.0
        %603 = vmatprep.subr.mxu0 0.0
        %604 = vmatpush1.msra.mxu0 0.0
        %605 = vmatprep.mubr.f32.mxu0 0.0
        %606 = vmatmul.mubr.f32.gmra.mrb[0].mxu0 %v536
        %v607 = vpop.f32.mrb[0].mxu0
        %v608 = vadd.f32 %v534, %v607
        %v609 = vpop.f32.mrb[0].mxu0
        %610 = vmatprep.mubr.f32.mxu0 0.0
        %611 = vmatmul.mubr.f32.gmra.mrb[0].mxu0 %v539
        %v612 = vpop.f32.mrb[0].mxu0
        %v613 = vadd.f32 %v534, %v612
        %v614 = vpop.f32.mrb[0].mxu0
        %615 = vdwg.mxu0
        %v616 = vmax.f32 %v608, 0.0
        %v617 = vmax.f32 %v613, 0.0
        %v618 = vmin.f32 %v616, 6.0
        %v619 = vmin.f32 %v617, 6.0
        %620 = vst.msk [vmem:[%s244] sm:$0xff] %vm449, %v618
        %621 = vst.msk [vmem:[%s244 + $0x8] sm:$0xff] %vm449, %v619
        %s622 = sand.u32 %s139, 1
        %s623 = scalar_lea.sflag [#allocation3], %s622
        %s624 = sand.u32 %s139, 1
        %s625 = smul.addr %s624, 16
        %s626 = scalar_lea.vmem [#allocation7], %s625
        // Predicated region
        $region49: #{tpu_custom_call.1} parent=39 // pred_check
          %p627 = pneg %p149
        $region50: #{tpu_custom_call.1} parent=39 // pred_check_branch
          %629 = sbr.rel (%p627) target = $region52
        $region51: #{tpu_custom_call.1} parent=39 // pred_region
          %s631 = ssub.s32 256, 256
          %632 = vsyncadd %s623, %s631
          %s633 = smul.addr %s21, 2
          %s634 = smul.addr %s633, 128
          %s635 = scalar_lea.hbm %s5, %s634
          %s636 = sshll.u32 %s626, 4
          %s637 = int_to_ptr.vmem [resolvable:$true] %s636
          %642 = dma.vmem_to_hbm [thread:$0]  %s637, 256, %s635, %s623, 128, 128, 8
        $region52: #{tpu_custom_call.1} parent=39 // pred_fallthru
          _
      $region40: #{tpu_custom_call.1} parent=5 // pred_fallthru
        _
      %p643 = scmp.le.s32.totalorder 2, %s16
      // Predicated region
      $region53: #{tpu_custom_call.1} parent=5 // pred_check
        %p644 = pneg %p643
      $region54: #{tpu_custom_call.1} parent=5 // pred_check_branch
        %646 = sbr.rel (%p644) target = $region56
      $region55: #{tpu_custom_call.1} parent=5 // pred_region
        %s647 = ssub.s32 %s16, 2
        // Predicated region
        $region57: #{tpu_custom_call.1} parent=55 // pred_check
          %p648 = pneg %p155
        $region58: #{tpu_custom_call.1} parent=55 // pred_check_branch
          %650 = sbr.rel (%p648) target = $region60
        $region59: #{tpu_custom_call.1} parent=55 // pred_region
          %s651 = sand.u32 %s140, 1
          %s652 = scalar_lea.sflag [#allocation3], %s651
          %s653 = sand.u32 %s140, 1
          %s654 = smul.addr %s653, 16
          %s655 = scalar_lea.vmem [#allocation7], %s654
          %656 = dma.done %s652, 256
        $region60: #{tpu_custom_call.1} parent=55 // pred_fallthru
          _
      $region56: #{tpu_custom_call.1} parent=5 // pred_fallthru
        _
    $region6: #{tpu_custom_call.1} parent=1 // loop_footer
      %s20 = sadd.s32 1, %s16
    $region7: #{tpu_custom_call.1} parent=1 // loop_footer_branch
      %15 = sbr.rel target = $region3
    $region8: #{tpu_custom_call.1} parent=1 // loop_exit
      _
    %657 = vsyncpa [#allocation3], 1
    %s658 = scalar_lea.sflag [#allocation3], 1
    %659 = vsyncpa %s658, 1
    %660 = vsyncpa [#allocation4], 1
    %s661 = scalar_lea.sflag [#allocation4], 1
    %662 = vsyncpa %s661, 1
    %663 = vsyncpa [#allocation6], 1

</llo_original>
